<compile_context>
chip_gen: v7x
topology: tpu7x:2x2x1
jax: 0.10.0
libtpu: 0.0.40
codegen_flags: <defaults>
</compile_context>

<pallas_src>
import functools

import jax
import jax.numpy as jnp
from jax.experimental import pallas as pl
from jax.experimental.pallas import tpu as pltpu


def _lrp_linear_kernel(a_ref, r_ref, w_ref, out_ref, a_t_ref, *acc_scratch,
                       eps, mm_dtype, acc_in_out):
    k = pl.program_id(1)
    acc_ref = out_ref if acc_in_out else acc_scratch[0]

    @pl.when(k == 0)
    def _init():
        # Transpose `a` once per batch block (it is resident across k). Keeping both matmuls
        # in MXU-native (lhs-minor x rhs-major) form means the big (block_dout, D_in) W tile
        # is never transposed -- vxpose would otherwise steal the shared vex slots from vmatmul.
        a_t_ref[...] = a_ref[...].astype(mm_dtype).T
        acc_ref[...] = jnp.zeros_like(acc_ref)

    # z_plus rule: W <- max(W, 0); fused so the raw weight is DMA'd from HBM exactly once.
    w = jnp.maximum(w_ref[...], 0).astype(mm_dtype)          # (block_dout, D_in)

    # z^T = W_tile @ a^T  -> (block_dout, block_b); MXU-native, no W transpose.
    z_t = jnp.dot(w, a_t_ref[...], preferred_element_type=jnp.float32) + eps
    z = z_t.T                                                 # only the small tile is transposed

    # s = r / z  -- divide on the EUP via approximate reciprocal; elementwise math in f32.
    s = r_ref[...].astype(jnp.float32) * pl.reciprocal(z, approx=True)

    # Partial c: acc += s_chunk @ W_tile  -> (block_b, D_in); also MXU-native.
    acc_ref[...] += jnp.dot(s.astype(mm_dtype), w,
                            preferred_element_type=jnp.float32).astype(acc_ref.dtype)

    @pl.when(k == pl.num_programs(1) - 1)
    def _finalize():
        out_ref[...] = (a_ref[...].astype(jnp.float32)
                        * acc_ref[...].astype(jnp.float32)).astype(out_ref.dtype)


def _vmem_budget_bytes():
    """~75% of the per-core VMEM capacity; conservative 64 MiB (v7x) fallback."""
    cap = None
    try:
        cap = getattr(pltpu.get_tpu_info(), "vmem_capacity_bytes", None)
    except Exception:
        cap = None
    if not cap or not isinstance(cap, int) or cap <= 0:
        cap = 64 * 1024 * 1024
    return int(0.75 * cap)


def _estimate_vmem(*, block_b, block_dout, D_in, a_sz, r_sz, w_sz, mm_sz, acc_in_out):
    """VMEM footprint: double-buffered pipeline tiles + in-kernel temps + scratch."""
    pipe = 2 * (block_b * D_in * a_sz              # a tile
                + block_b * block_dout * r_sz      # r tile
                + block_dout * D_in * w_sz         # W tile (streamed over k)
                + block_b * D_in * a_sz)           # out tile
    temps = (block_dout * D_in * mm_sz             # clamped (and possibly cast) W value
             + 3 * block_b * block_dout * 4)       # z^T, z, s (f32)
    scratch = D_in * block_b * mm_sz               # a^T scratch
    if not acc_in_out:
        scratch += block_b * D_in * 4               # f32 accumulator scratch
    return pipe + temps + scratch


def _candidates(dim, preferred):
    """Descending tile candidates that divide `dim`; the full extent is always legal."""
    return sorted({t for t in preferred if t <= dim and dim % t == 0} | {dim}, reverse=True)


def lrp_linear(a, r, weight, *, eps=1e-5, mode="z_plus", matmul_dtype=None,
               block_b=None, block_dout=None):
    """LRP (z_plus) relevance backward pass for a Linear layer.

    a:      (B, D_in)  activations entering the linear layer (post-ReLU, >= 0)
    r:      (B, D_out) relevance at the layer output
    weight: (D_out, D_in) linear weight (PyTorch convention, raw / un-clamped)
    returns (B, D_in) relevance propagated to the layer input
    """
    B, D_in = a.shape
    Bo, D_out = r.shape
    assert B == Bo and weight.shape == (D_out, D_in)
    assert mode == "z_plus", "only the z_plus rule (LinearLRP default) is implemented"

    mm_dtype = jnp.dtype(matmul_dtype) if matmul_dtype is not None else jnp.dtype(weight.dtype)
    acc_in_out = jnp.dtype(a.dtype) == jnp.dtype(jnp.float32)   # accumulate directly in out_ref

    a_sz = jnp.dtype(a.dtype).itemsize
    r_sz = jnp.dtype(r.dtype).itemsize
    w_sz = jnp.dtype(weight.dtype).itemsize
    mm_sz = mm_dtype.itemsize

    budget = _vmem_budget_bytes()
    est = functools.partial(_estimate_vmem, D_in=D_in, a_sz=a_sz, r_sz=r_sz,
                            w_sz=w_sz, mm_sz=mm_sz, acc_in_out=acc_in_out)

    # block_b: cap at 512 (above v6e's ~680 FLOP/byte balance for re-streamed bf16 W);
    # keep >= 2 batch steps at real batch sizes so v7x's two TensorCores both get work,
    # but allow a single block for small problems (per-step overhead dominates there).
    bb_cands = [block_b] if block_b is not None else _candidates(B, (512, 256, 128, 64, 32, 16, 8))
    if block_b is None and B >= 256:
        multi = [t for t in bb_cands if B // t >= 2]
        if multi:
            bb_cands = multi
    bd_cands = [block_dout] if block_dout is not None else _candidates(D_out, (512, 256, 128))

    chosen = None
    for bb in bb_cands:
        for bd in bd_cands:
            if est(block_b=bb, block_dout=bd) <= budget:
                chosen = (bb, bd)
                break
        if chosen is not None:
            break
    if chosen is None:
        chosen = (bb_cands[-1], bd_cands[-1])   # smallest tiles; see D_in-tiling TODO above
    block_b, block_dout = chosen
    assert B % block_b == 0 and D_out % block_dout == 0

    vmem_est = est(block_b=block_b, block_dout=block_dout)
    # Always set a scoped limit from the corrected estimate (v5e's default is only 16 MiB);
    # generous headroom, capped at the per-generation budget.
    vmem_limit = int(min(max(2 * vmem_est + (4 << 20), 32 << 20), max(budget, 32 << 20)))

    kernel = functools.partial(_lrp_linear_kernel, eps=float(eps),
                               mm_dtype=mm_dtype, acc_in_out=acc_in_out)
    grid = (B // block_b, D_out // block_dout)

    scratch_shapes = [pltpu.VMEM((D_in, block_b), mm_dtype)]            # a^T (reused across k)
    if not acc_in_out:
        scratch_shapes.append(pltpu.VMEM((block_b, D_in), jnp.float32))  # f32 accumulator

    return pl.pallas_call(
        kernel,
        out_shape=jax.ShapeDtypeStruct((B, D_in), a.dtype),
        grid_spec=pltpu.PrefetchScalarGridSpec(
            num_scalar_prefetch=0,
            grid=grid,
            in_specs=[
                pl.BlockSpec((block_b, D_in), lambda i, k: (i, 0)),        # a (resident across k)
                pl.BlockSpec((block_b, block_dout), lambda i, k: (i, k)),  # r chunk
                pl.BlockSpec((block_dout, D_in), lambda i, k: (k, 0)),     # W tile, streamed over k
            ],
            out_specs=pl.BlockSpec((block_b, D_in), lambda i, k: (i, 0)),  # resident across k
            scratch_shapes=scratch_shapes,
        ),
        compiler_params=pltpu.CompilerParams(
            dimension_semantics=("parallel", "arbitrary"),
            vmem_limit_bytes=vmem_limit,
        ),
    )(a, r, weight)


def lrp_linear_ref(a, r, weight, *, eps=1e-5):
    """Pure-JAX reference (mirrors the PyTorch z_plus forward exactly)."""
    w = jnp.maximum(weight, 0.0)
    z = a @ w.T + eps
    s = r / z
    c = s @ w
    return a * c


if __name__ == "__main__":
    key = jax.random.PRNGKey(0)
    k_a, k_r, k_w = jax.random.split(key, 3)

    B, D_in, D_out = 16, 256, 256
    a = jax.random.uniform(k_a, (B, D_in), dtype=jnp.float32)    # post-ReLU activations >= 0
    r = jax.random.uniform(k_r, (B, D_out), dtype=jnp.float32)
    w = jax.random.normal(k_w, (D_out, D_in), dtype=jnp.float32)

    ref = lrp_linear_ref(a, r, w, eps=1e-5)

    # 1) Default tile selection (small problem -> single grid step per axis, lowest overhead).
    out = jax.block_until_ready(lrp_linear(a, r, w, eps=1e-5))
    assert out.shape == (B, D_in)
    err = float(jnp.max(jnp.abs(out - ref)))
    # Tolerance covers the ~2^-12 relative error of the EUP approximate reciprocal on HW.
    assert jnp.allclose(out, ref, atol=2e-3, rtol=2e-3), f"max abs err = {err}"

    # 2) Forced 2x2 grid: exercises the resident accumulator, the per-batch-block a^T reuse,
    #    and the W streaming over the reduction axis.
    out2 = jax.block_until_ready(lrp_linear(a, r, w, eps=1e-5, block_b=8, block_dout=128))
    err2 = float(jnp.max(jnp.abs(out2 - ref)))
    assert jnp.allclose(out2, ref, atol=2e-3, rtol=2e-3), f"max abs err = {err2}"

    # 3) bf16 inputs/weights path (matmuls in bf16, accumulation/divide in f32, bf16 output;
    #    also exercises the f32 scratch-accumulator branch).
    a16, r16, w16 = a.astype(jnp.bfloat16), r.astype(jnp.bfloat16), w.astype(jnp.bfloat16)
    ref16 = lrp_linear_ref(a16.astype(jnp.float32), r16.astype(jnp.float32),
                           w16.astype(jnp.float32), eps=1e-5)
    out16 = jax.block_until_ready(lrp_linear(a16, r16, w16, eps=1e-5, block_dout=128))
    err16 = float(jnp.max(jnp.abs(out16.astype(jnp.float32) - ref16)))
    assert jnp.allclose(out16.astype(jnp.float32), ref16, atol=5e-2, rtol=5e-2), \
        f"bf16 max abs err = {err16}"

    print("KERNEL_OK")
</pallas_src>

<mosaic_0001>
module attributes {stable_mosaic.version = 11 : i64} {
  func.func @_lrp_linear_kernel(%arg0: i32, %arg1: i32, %arg2: memref<16x256xf32, #tpu.memory_space<vmem>>, %arg3: memref<16x256xf32, #tpu.memory_space<vmem>>, %arg4: memref<256x256xf32, #tpu.memory_space<vmem>>, %arg5: memref<16x256xf32, #tpu.memory_space<vmem>>, %arg6: memref<256x16xf32, #tpu.memory_space<vmem>>) attributes {dimension_semantics = [#tpu.dimension_semantics<parallel>, #tpu.dimension_semantics<arbitrary>], iteration_bounds = array<i64: 1, 1>, scalar_prefetch = 0 : i64, scratch_operands = 1 : i64, tpu.core_type = #tpu.core_type<tc>, window_params = [{transform_indices = @transform_0, window_bounds = array<i64: 16, 256>}, {transform_indices = @transform_1, window_bounds = array<i64: 16, 256>}, {transform_indices = @transform_2, window_bounds = array<i64: 256, 256>}, {transform_indices = @transform_3, window_bounds = array<i64: 16, 256>}]} {
    %c0_i32 = arith.constant 0 : i32
    %0 = arith.cmpi eq, %arg1, %c0_i32 : i32
    %1 = arith.extui %0 : i1 to i32
    %c0_i32_0 = arith.constant 0 : i32
    %2 = arith.cmpi ne, %1, %c0_i32_0 : i32
    scf.if %2 {
      %c0_15 = arith.constant 0 : index
      %c0_16 = arith.constant 0 : index
      %21 = vector.load %arg2[%c0_15, %c0_16] : memref<16x256xf32, #tpu.memory_space<vmem>>, vector<16x256xf32>
      %22 = tpu.transpose %21, [1, 0] : vector<16x256xf32> -> vector<256x16xf32>
      %c0_17 = arith.constant 0 : index
      %c0_18 = arith.constant 0 : index
      %23 = vector.load %arg6[%c0_17, %c0_18] : memref<256x16xf32, #tpu.memory_space<vmem>>, vector<256x16xf32>
      tpu.vector_store %arg6[%c0_17, %c0_18], %22 {strides = array<i32>} : memref<256x16xf32, #tpu.memory_space<vmem>>, vector<256x16xf32>,
      %cst_19 = arith.constant 0.000000e+00 : f32
      %24 = vector.broadcast %cst_19 : f32 to vector<16x256xf32>
      %c0_20 = arith.constant 0 : index
      %c0_21 = arith.constant 0 : index
      %25 = vector.load %arg5[%c0_20, %c0_21] : memref<16x256xf32, #tpu.memory_space<vmem>>, vector<16x256xf32>
      tpu.vector_store %arg5[%c0_20, %c0_21], %24 {strides = array<i32>} : memref<16x256xf32, #tpu.memory_space<vmem>>, vector<16x256xf32>,
    } else {
    }
    %c0 = arith.constant 0 : index
    %c0_1 = arith.constant 0 : index
    %3 = vector.load %arg4[%c0, %c0_1] : memref<256x256xf32, #tpu.memory_space<vmem>>, vector<256x256xf32>
    %cst = arith.constant 0.000000e+00 : f32
    %4 = vector.broadcast %cst : f32 to vector<256x256xf32>
    %5 = arith.maximumf %3, %4 : vector<256x256xf32>
    %c0_2 = arith.constant 0 : index
    %c0_3 = arith.constant 0 : index
    %6 = vector.load %arg6[%c0_2, %c0_3] : memref<256x16xf32, #tpu.memory_space<vmem>>, vector<256x16xf32>
    %cst_4 = arith.constant dense<0.000000e+00> : vector<256x16xf32>
    %7 = tpu.matmul %5, %6, %cst_4 {dimension_numbers = #tpu.dot_dimension_numbers<[1], [0], [0], [1], [0, 0, 1, 1], [], []>} : vector<256x256xf32>, vector<256x16xf32>, vector<256x16xf32> -> vector<256x16xf32>
    %cst_5 = arith.constant 9.99999974E-6 : f32
    %8 = vector.broadcast %cst_5 : f32 to vector<256x16xf32>
    %9 = arith.addf %7, %8 : vector<256x16xf32>
    %10 = tpu.transpose %9, [1, 0] : vector<256x16xf32> -> vector<16x256xf32>
    %c0_6 = arith.constant 0 : index
    %c0_7 = arith.constant 0 : index
    %11 = vector.load %arg3[%c0_6, %c0_7] : memref<16x256xf32, #tpu.memory_space<vmem>>, vector<16x256xf32>
    %12 = tpu.reciprocal %10 {approx = true} : vector<16x256xf32> -> vector<16x256xf32>
    %13 = arith.mulf %11, %12 : vector<16x256xf32>
    %c0_8 = arith.constant 0 : index
    %c0_9 = arith.constant 0 : index
    %14 = vector.load %arg5[%c0_8, %c0_9] : memref<16x256xf32, #tpu.memory_space<vmem>>, vector<16x256xf32>
    %cst_10 = arith.constant dense<0.000000e+00> : vector<16x256xf32>
    %15 = tpu.matmul %13, %5, %cst_10 {dimension_numbers = #tpu.dot_dimension_numbers<[1], [0], [0], [1], [0, 0, 1, 1], [], []>} : vector<16x256xf32>, vector<256x256xf32>, vector<16x256xf32> -> vector<16x256xf32>
    %16 = arith.addf %14, %15 : vector<16x256xf32>
    %c0_11 = arith.constant 0 : index
    %c0_12 = arith.constant 0 : index
    %17 = vector.load %arg5[%c0_11, %c0_12] : memref<16x256xf32, #tpu.memory_space<vmem>>, vector<16x256xf32>
    tpu.vector_store %arg5[%c0_11, %c0_12], %16 {strides = array<i32>} : memref<16x256xf32, #tpu.memory_space<vmem>>, vector<16x256xf32>,
    %c0_i32_13 = arith.constant 0 : i32
    %18 = arith.cmpi eq, %arg1, %c0_i32_13 : i32
    %19 = arith.extui %18 : i1 to i32
    %c0_i32_14 = arith.constant 0 : i32
    %20 = arith.cmpi ne, %19, %c0_i32_14 : i32
    scf.if %20 {
      %c0_15 = arith.constant 0 : index
      %c0_16 = arith.constant 0 : index
      %21 = vector.load %arg2[%c0_15, %c0_16] : memref<16x256xf32, #tpu.memory_space<vmem>>, vector<16x256xf32>
      %c0_17 = arith.constant 0 : index
      %c0_18 = arith.constant 0 : index
      %22 = vector.load %arg5[%c0_17, %c0_18] : memref<16x256xf32, #tpu.memory_space<vmem>>, vector<16x256xf32>
      %23 = arith.mulf %21, %22 : vector<16x256xf32>
      %c0_19 = arith.constant 0 : index
      %c0_20 = arith.constant 0 : index
      %24 = vector.load %arg5[%c0_19, %c0_20] : memref<16x256xf32, #tpu.memory_space<vmem>>, vector<16x256xf32>
      tpu.vector_store %arg5[%c0_19, %c0_20], %23 {strides = array<i32>} : memref<16x256xf32, #tpu.memory_space<vmem>>, vector<16x256xf32>,
    } else {
    }
    return
  }
  func.func @transform_0(%arg0: i32, %arg1: i32) -> (i32, i32) {
    %c0_i32 = arith.constant 0 : i32
    %c0_i32_0 = arith.constant 0 : i32
    return %arg0, %c0_i32 : i32, i32
  }
  func.func @transform_1(%arg0: i32, %arg1: i32) -> (i32, i32) {
    %c0_i32 = arith.constant 0 : i32
    return %arg0, %arg1 : i32, i32
  }
  func.func @transform_2(%arg0: i32, %arg1: i32) -> (i32, i32) {
    %c0_i32 = arith.constant 0 : i32
    %c0_i32_0 = arith.constant 0 : i32
    return %arg1, %c0_i32 : i32, i32
  }
  func.func @transform_3(%arg0: i32, %arg1: i32) -> (i32, i32) {
    %c0_i32 = arith.constant 0 : i32
    %c0_i32_0 = arith.constant 0 : i32
    return %arg0, %c0_i32 : i32, i32
  }
}

</mosaic_0001>

<llo_original>
// kernel: tpu_custom_call.1
$region0: #{tpu_custom_call.1}
  #allocation0 [shape = 'u32[]', space=smem, size = 0x4, offset = 0x4, fixed_abs, tag = 'smem constant byte address 0x4 - core index']
  #allocation1 [shape = 'u32[144,128]{1,0:T(1,128)}', space=vmem, size = 0x12000, scoped, tag = 'internal scratch']
  #allocation2 [shape = 'f32[256,16]{1,0:T(8,128)}', space=vmem, size = 0x20000, scoped, tag = 'scratch operand']
  %s0 = inlined_call_operand.hbm [shape: f32[16,256], index: 0, kind: input, shape index: {}]
  %s1 = inlined_call_operand.hbm [shape: f32[16,256], index: 1, kind: input, shape index: {}]
  %s2 = inlined_call_operand.hbm [shape: f32[256,256], index: 2, kind: input, shape index: {}]
  %s3 = inlined_call_operand.hbm [shape: f32[16,256], index: 3, kind: output, shape index: {}]
  %s4 = sld [smem:[#allocation0]]
  $region42: #{tpu_custom_call.1} parent=0
    _
  %s6 = ssub.s32 1, %s4
  %s7 = scalar_select 0, %s6, %s4
  $region1: #{tpu_custom_call.1} parent=0
    #allocation3 [shape = 'u8[16384]{0}', space=vmem, size = 0x4000, scoped, tag = 'input window, operand 0, single buffered']
    #allocation4 [shape = 's32[1]{0}', space=sflag, size = 0x4, scoped, tag = 'scoped memory for tpu_custom_call.1']
    #allocation5 [shape = 's32[1]{0}', space=sflag, size = 0x4, scoped, tag = 'scoped memory for tpu_custom_call.1']
    #allocation6 [shape = 'u8[16384]{0}', space=vmem, size = 0x4000, scoped, tag = 'input window, operand 1, single buffered']
    #allocation7 [shape = 's32[1]{0}', space=sflag, size = 0x4, scoped, tag = 'scoped memory for tpu_custom_call.1']
    #allocation8 [shape = 'u8[262144]{0}', space=vmem, size = 0x40000, scoped, tag = 'input window, operand 2, single buffered']
    #allocation9 [shape = 'u8[16384]{0}', space=vmem, size = 0x4000, scoped, tag = 'output window, operand 0, single buffered']
    %8 = vsyncpa [#allocation4], 0
    %9 = vsyncpa [#allocation7], 0
    %10 = vsyncpa [#allocation5], 0
    // Predicated region
    $region2: #{tpu_custom_call.1} parent=1 // pred_check
      _
    $region3: #{tpu_custom_call.1} parent=1 // pred_check_branch
      %12 = sbr.rel (0) target = $region5
    $region4: #{tpu_custom_call.1} parent=1 // pred_region
      %s14 = ssub.s32 512, 512
      %15 = vsyncadd [#allocation4], %s14
      %s16 = sshll.u32 [#allocation3], 4
      %s17 = int_to_ptr.vmem [resolvable:$true] %s16
      %22 = dma.hbm_to_vmem [thread:$0]  %s0, 512, %s17, [#allocation4], 256, 256, 16
    $region5: #{tpu_custom_call.1} parent=1 // pred_fallthru
      _
    // Predicated region
    $region6: #{tpu_custom_call.1} parent=1 // pred_check
      _
    $region7: #{tpu_custom_call.1} parent=1 // pred_check_branch
      %24 = sbr.rel (0) target = $region9
    $region8: #{tpu_custom_call.1} parent=1 // pred_region
      %s26 = ssub.s32 512, 512
      %27 = vsyncadd [#allocation7], %s26
      %s28 = sshll.u32 [#allocation6], 4
      %s29 = int_to_ptr.vmem [resolvable:$true] %s28
      %34 = dma.hbm_to_vmem [thread:$0]  %s1, 512, %s29, [#allocation7], 256, 256, 16
    $region9: #{tpu_custom_call.1} parent=1 // pred_fallthru
      _
    // Predicated region
    $region10: #{tpu_custom_call.1} parent=1 // pred_check
      _
    $region11: #{tpu_custom_call.1} parent=1 // pred_check_branch
      %36 = sbr.rel (0) target = $region13
    $region12: #{tpu_custom_call.1} parent=1 // pred_region
      %s38 = ssub.s32 8192, 8192
      %39 = vsyncadd [#allocation7], %s38
      %s40 = sshll.u32 [#allocation8], 4
      %s41 = int_to_ptr.vmem [resolvable:$true] %s40
      %46 = dma.hbm_to_vmem [thread:$0]  %s2, 8192, %s41, [#allocation7], 256, 256, 16
    $region13: #{tpu_custom_call.1} parent=1 // pred_fallthru
      _
    // Predicated region
    $region14: #{tpu_custom_call.1} parent=1 // pred_check
      _
    $region15: #{tpu_custom_call.1} parent=1 // pred_check_branch
      %48 = sbr.rel (0) target = $region17
    $region16: #{tpu_custom_call.1} parent=1 // pred_region
      %49 = dma.done [#allocation4], 512
    $region17: #{tpu_custom_call.1} parent=1 // pred_fallthru
      _
    // Predicated region
    $region18: #{tpu_custom_call.1} parent=1 // pred_check
      _
    $region19: #{tpu_custom_call.1} parent=1 // pred_check_branch
      %51 = sbr.rel (0) target = $region21
    $region20: #{tpu_custom_call.1} parent=1 // pred_region
      %52 = dma.done [#allocation7], 512
    $region21: #{tpu_custom_call.1} parent=1 // pred_fallthru
      _
    // Predicated region
    $region22: #{tpu_custom_call.1} parent=1 // pred_check
      _
    $region23: #{tpu_custom_call.1} parent=1 // pred_check_branch
      %54 = sbr.rel (0) target = $region25
    $region24: #{tpu_custom_call.1} parent=1 // pred_region
      %55 = dma.done [#allocation7], 8192
    $region25: #{tpu_custom_call.1} parent=1 // pred_fallthru
      _
    %p56 = scmp.eq.s32.totalorder 0, 0
    // Predicated region
    $region26: #{tpu_custom_call.1} parent=1 // pred_check
      %p57 = pneg %p56
    $region27: #{tpu_custom_call.1} parent=1 // pred_check_branch
      %59 = sbr.rel (%p57) target = $region29
    $region28: #{tpu_custom_call.1} parent=1 // pred_region
      %v60 = vld [vmem:[#allocation3] sm:$0xff]
      %v61 = vld [vmem:[#allocation3 + $0x8] sm:$0xff]
      %v62 = vld [vmem:[#allocation3 + $0x10] sm:$0xff]
      %v63 = vld [vmem:[#allocation3 + $0x18] sm:$0xff]
      %64 = vxpose.xlu0.b32.start [1/16] %v60, 128
      %65 = vxpose.xlu0.b32.cont [2/16] %v62, 128
      %66 = vxpose.xlu0.b32.cont [3/16] 0.0, 128
      %67 = vxpose.xlu0.b32.cont [4/16] 0.0, 128
      %68 = vxpose.xlu0.b32.cont [5/16] 0.0, 128
      %69 = vxpose.xlu0.b32.cont [6/16] 0.0, 128
      %70 = vxpose.xlu0.b32.cont [7/16] 0.0, 128
      %71 = vxpose.xlu0.b32.cont [8/16] 0.0, 128
      %72 = vxpose.xlu0.b32.cont [9/16] 0.0, 128
      %73 = vxpose.xlu0.b32.cont [10/16] 0.0, 128
      %74 = vxpose.xlu0.b32.cont [11/16] 0.0, 128
      %75 = vxpose.xlu0.b32.cont [12/16] 0.0, 128
      %76 = vxpose.xlu0.b32.cont [13/16] 0.0, 128
      %77 = vxpose.xlu0.b32.cont [14/16] 0.0, 128
      %78 = vxpose.xlu0.b32.cont [15/16] 0.0, 128
      %79 = vxpose.xlu0.b32.end [16/16] 0.0, 128
      %v80 = vpop.trf.xlu0
      %v81 = vpop.trf.xlu0
      %v82 = vpop.trf.xlu0
      %v83 = vpop.trf.xlu0
      %v84 = vpop.trf.xlu0
      %v85 = vpop.trf.xlu0
      %v86 = vpop.trf.xlu0
      %v87 = vpop.trf.xlu0
      %v88 = vpop.trf.xlu0
      %v89 = vpop.trf.xlu0
      %v90 = vpop.trf.xlu0
      %v91 = vpop.trf.xlu0
      %v92 = vpop.trf.xlu0
      %v93 = vpop.trf.xlu0
      %v94 = vpop.trf.xlu0
      %v95 = vpop.trf.xlu0
      %96 = vxpose.xlu0.b32.start [1/16] %v61, 128
      %97 = vxpose.xlu0.b32.cont [2/16] %v63, 128
      %98 = vxpose.xlu0.b32.cont [3/16] 0.0, 128
      %99 = vxpose.xlu0.b32.cont [4/16] 0.0, 128
      %100 = vxpose.xlu0.b32.cont [5/16] 0.0, 128
      %101 = vxpose.xlu0.b32.cont [6/16] 0.0, 128
      %102 = vxpose.xlu0.b32.cont [7/16] 0.0, 128
      %103 = vxpose.xlu0.b32.cont [8/16] 0.0, 128
      %104 = vxpose.xlu0.b32.cont [9/16] 0.0, 128
      %105 = vxpose.xlu0.b32.cont [10/16] 0.0, 128
      %106 = vxpose.xlu0.b32.cont [11/16] 0.0, 128
      %107 = vxpose.xlu0.b32.cont [12/16] 0.0, 128
      %108 = vxpose.xlu0.b32.cont [13/16] 0.0, 128
      %109 = vxpose.xlu0.b32.cont [14/16] 0.0, 128
      %110 = vxpose.xlu0.b32.cont [15/16] 0.0, 128
      %111 = vxpose.xlu0.b32.end [16/16] 0.0, 128
      %v112 = vpop.trf.xlu0
      %v113 = vpop.trf.xlu0
      %v114 = vpop.trf.xlu0
      %v115 = vpop.trf.xlu0
      %v116 = vpop.trf.xlu0
      %v117 = vpop.trf.xlu0
      %v118 = vpop.trf.xlu0
      %v119 = vpop.trf.xlu0
      %v120 = vpop.trf.xlu0
      %v121 = vpop.trf.xlu0
      %v122 = vpop.trf.xlu0
      %v123 = vpop.trf.xlu0
      %v124 = vpop.trf.xlu0
      %v125 = vpop.trf.xlu0
      %v126 = vpop.trf.xlu0
      %v127 = vpop.trf.xlu0
      %vm128 = vcmask 130048
      %129 = vst.msk [vmem:[#allocation2] sm:$0xff] %vm128, %v80
      %130 = vst.msk [vmem:[#allocation2 + $0x8] sm:$0xff] %vm128, %v81
      %131 = vst.msk [vmem:[#allocation2 + $0x10] sm:$0xff] %vm128, %v82
      %132 = vst.msk [vmem:[#allocation2 + $0x18] sm:$0xff] %vm128, %v83
      %133 = vst.msk [vmem:[#allocation2 + $0x20] sm:$0xff] %vm128, %v84
      %134 = vst.msk [vmem:[#allocation2 + $0x28] sm:$0xff] %vm128, %v85
      %135 = vst.msk [vmem:[#allocation2 + $0x30] sm:$0xff] %vm128, %v86
      %136 = vst.msk [vmem:[#allocation2 + $0x38] sm:$0xff] %vm128, %v87
      %137 = vst.msk [vmem:[#allocation2 + $0x40] sm:$0xff] %vm128, %v88
      %138 = vst.msk [vmem:[#allocation2 + $0x48] sm:$0xff] %vm128, %v89
      %139 = vst.msk [vmem:[#allocation2 + $0x50] sm:$0xff] %vm128, %v90
      %140 = vst.msk [vmem:[#allocation2 + $0x58] sm:$0xff] %vm128, %v91
      %141 = vst.msk [vmem:[#allocation2 + $0x60] sm:$0xff] %vm128, %v92
      %142 = vst.msk [vmem:[#allocation2 + $0x68] sm:$0xff] %vm128, %v93
      %143 = vst.msk [vmem:[#allocation2 + $0x70] sm:$0xff] %vm128, %v94
      %144 = vst.msk [vmem:[#allocation2 + $0x78] sm:$0xff] %vm128, %v95
      %145 = vst.msk [vmem:[#allocation2 + $0x80] sm:$0xff] %vm128, %v112
      %146 = vst.msk [vmem:[#allocation2 + $0x88] sm:$0xff] %vm128, %v113
      %147 = vst.msk [vmem:[#allocation2 + $0x90] sm:$0xff] %vm128, %v114
      %148 = vst.msk [vmem:[#allocation2 + $0x98] sm:$0xff] %vm128, %v115
      %149 = vst.msk [vmem:[#allocation2 + $0xa0] sm:$0xff] %vm128, %v116
      %150 = vst.msk [vmem:[#allocation2 + $0xa8] sm:$0xff] %vm128, %v117
      %151 = vst.msk [vmem:[#allocation2 + $0xb0] sm:$0xff] %vm128, %v118
      %152 = vst.msk [vmem:[#allocation2 + $0xb8] sm:$0xff] %vm128, %v119
      %153 = vst.msk [vmem:[#allocation2 + $0xc0] sm:$0xff] %vm128, %v120
      %154 = vst.msk [vmem:[#allocation2 + $0xc8] sm:$0xff] %vm128, %v121
      %155 = vst.msk [vmem:[#allocation2 + $0xd0] sm:$0xff] %vm128, %v122
      %156 = vst.msk [vmem:[#allocation2 + $0xd8] sm:$0xff] %vm128, %v123
      %157 = vst.msk [vmem:[#allocation2 + $0xe0] sm:$0xff] %vm128, %v124
      %158 = vst.msk [vmem:[#allocation2 + $0xe8] sm:$0xff] %vm128, %v125
      %159 = vst.msk [vmem:[#allocation2 + $0xf0] sm:$0xff] %vm128, %v126
      %160 = vst.msk [vmem:[#allocation2 + $0xf8] sm:$0xff] %vm128, %v127
      %161 = vst [vmem:[#allocation9] sm:$0xff] 0.0
      %162 = vst [vmem:[#allocation9 + $0x8] sm:$0xff] 0.0
      %163 = vst [vmem:[#allocation9 + $0x10] sm:$0xff] 0.0
      %164 = vst [vmem:[#allocation9 + $0x18] sm:$0xff] 0.0
    $region29: #{tpu_custom_call.1} parent=1 // pred_fallthru
      _
    %v165 = vld [vmem:[#allocation8] sm:$0xff]
    %v166 = vld [vmem:[#allocation8 + $0x8] sm:$0xff]
    %v167 = vld [vmem:[#allocation8 + $0x10] sm:$0xff]
    %v168 = vld [vmem:[#allocation8 + $0x18] sm:$0xff]
    %v169 = vld [vmem:[#allocation8 + $0x20] sm:$0xff]
    %v170 = vld [vmem:[#allocation8 + $0x28] sm:$0xff]
    %v171 = vld [vmem:[#allocation8 + $0x30] sm:$0xff]
    %v172 = vld [vmem:[#allocation8 + $0x38] sm:$0xff]
    %v173 = vld [vmem:[#allocation8 + $0x40] sm:$0xff]
    %v174 = vld [vmem:[#allocation8 + $0x48] sm:$0xff]
    %v175 = vld [vmem:[#allocation8 + $0x50] sm:$0xff]
    %v176 = vld [vmem:[#allocation8 + $0x58] sm:$0xff]
    %v177 = vld [vmem:[#allocation8 + $0x60] sm:$0xff]
    %v178 = vld [vmem:[#allocation8 + $0x68] sm:$0xff]
    %v179 = vld [vmem:[#allocation8 + $0x70] sm:$0xff]
    %v180 = vld [vmem:[#allocation8 + $0x78] sm:$0xff]
    %v181 = vld [vmem:[#allocation8 + $0x80] sm:$0xff]
    %v182 = vld [vmem:[#allocation8 + $0x88] sm:$0xff]
    %v183 = vld [vmem:[#allocation8 + $0x90] sm:$0xff]
    %v184 = vld [vmem:[#allocation8 + $0x98] sm:$0xff]
    %v185 = vld [vmem:[#allocation8 + $0xa0] sm:$0xff]
    %v186 = vld [vmem:[#allocation8 + $0xa8] sm:$0xff]
    %v187 = vld [vmem:[#allocation8 + $0xb0] sm:$0xff]
    %v188 = vld [vmem:[#allocation8 + $0xb8] sm:$0xff]
    %v189 = vld [vmem:[#allocation8 + $0xc0] sm:$0xff]
    %v190 = vld [vmem:[#allocation8 + $0xc8] sm:$0xff]
    %v191 = vld [vmem:[#allocation8 + $0xd0] sm:$0xff]
    %v192 = vld [vmem:[#allocation8 + $0xd8] sm:$0xff]
    %v193 = vld [vmem:[#allocation8 + $0xe0] sm:$0xff]
    %v194 = vld [vmem:[#allocation8 + $0xe8] sm:$0xff]
    %v195 = vld [vmem:[#allocation8 + $0xf0] sm:$0xff]
    %v196 = vld [vmem:[#allocation8 + $0xf8] sm:$0xff]
    %v197 = vld [vmem:[#allocation8 + $0x100] sm:$0xff]
    %v198 = vld [vmem:[#allocation8 + $0x108] sm:$0xff]
    %v199 = vld [vmem:[#allocation8 + $0x110] sm:$0xff]
    %v200 = vld [vmem:[#allocation8 + $0x118] sm:$0xff]
    %v201 = vld [vmem:[#allocation8 + $0x120] sm:$0xff]
    %v202 = vld [vmem:[#allocation8 + $0x128] sm:$0xff]
    %v203 = vld [vmem:[#allocation8 + $0x130] sm:$0xff]
    %v204 = vld [vmem:[#allocation8 + $0x138] sm:$0xff]
    %v205 = vld [vmem:[#allocation8 + $0x140] sm:$0xff]
    %v206 = vld [vmem:[#allocation8 + $0x148] sm:$0xff]
    %v207 = vld [vmem:[#allocation8 + $0x150] sm:$0xff]
    %v208 = vld [vmem:[#allocation8 + $0x158] sm:$0xff]
    %v209 = vld [vmem:[#allocation8 + $0x160] sm:$0xff]
    %v210 = vld [vmem:[#allocation8 + $0x168] sm:$0xff]
    %v211 = vld [vmem:[#allocation8 + $0x170] sm:$0xff]
    %v212 = vld [vmem:[#allocation8 + $0x178] sm:$0xff]
    %v213 = vld [vmem:[#allocation8 + $0x180] sm:$0xff]
    %v214 = vld [vmem:[#allocation8 + $0x188] sm:$0xff]
    %v215 = vld [vmem:[#allocation8 + $0x190] sm:$0xff]
    %v216 = vld [vmem:[#allocation8 + $0x198] sm:$0xff]
    %v217 = vld [vmem:[#allocation8 + $0x1a0] sm:$0xff]
    %v218 = vld [vmem:[#allocation8 + $0x1a8] sm:$0xff]
    %v219 = vld [vmem:[#allocation8 + $0x1b0] sm:$0xff]
    %v220 = vld [vmem:[#allocation8 + $0x1b8] sm:$0xff]
    %v221 = vld [vmem:[#allocation8 + $0x1c0] sm:$0xff]
    %v222 = vld [vmem:[#allocation8 + $0x1c8] sm:$0xff]
    %v223 = vld [vmem:[#allocation8 + $0x1d0] sm:$0xff]
    %v224 = vld [vmem:[#allocation8 + $0x1d8] sm:$0xff]
    %v225 = vld [vmem:[#allocation8 + $0x1e0] sm:$0xff]
    %v226 = vld [vmem:[#allocation8 + $0x1e8] sm:$0xff]
    %v227 = vld [vmem:[#allocation8 + $0x1f0] sm:$0xff]
    %v228 = vld [vmem:[#allocation8 + $0x1f8] sm:$0xff]
    %v229 = vmax.f32 %v165, 0.0
    %v230 = vmax.f32 %v166, 0.0
    %v231 = vmax.f32 %v167, 0.0
    %v232 = vmax.f32 %v168, 0.0
    %v233 = vmax.f32 %v169, 0.0
    %v234 = vmax.f32 %v170, 0.0
    %v235 = vmax.f32 %v171, 0.0
    %v236 = vmax.f32 %v172, 0.0
    %v237 = vmax.f32 %v173, 0.0
    %v238 = vmax.f32 %v174, 0.0
    %v239 = vmax.f32 %v175, 0.0
    %v240 = vmax.f32 %v176, 0.0
    %v241 = vmax.f32 %v177, 0.0
    %v242 = vmax.f32 %v178, 0.0
    %v243 = vmax.f32 %v179, 0.0
    %v244 = vmax.f32 %v180, 0.0
    %v245 = vmax.f32 %v181, 0.0
    %v246 = vmax.f32 %v182, 0.0
    %v247 = vmax.f32 %v183, 0.0
    %v248 = vmax.f32 %v184, 0.0
    %v249 = vmax.f32 %v185, 0.0
    %v250 = vmax.f32 %v186, 0.0
    %v251 = vmax.f32 %v187, 0.0
    %v252 = vmax.f32 %v188, 0.0
    %v253 = vmax.f32 %v189, 0.0
    %v254 = vmax.f32 %v190, 0.0
    %v255 = vmax.f32 %v191, 0.0
    %v256 = vmax.f32 %v192, 0.0
    %v257 = vmax.f32 %v193, 0.0
    %v258 = vmax.f32 %v194, 0.0
    %v259 = vmax.f32 %v195, 0.0
    %v260 = vmax.f32 %v196, 0.0
    %v261 = vmax.f32 %v197, 0.0
    %v262 = vmax.f32 %v198, 0.0
    %v263 = vmax.f32 %v199, 0.0
    %v264 = vmax.f32 %v200, 0.0
    %v265 = vmax.f32 %v201, 0.0
    %v266 = vmax.f32 %v202, 0.0
    %v267 = vmax.f32 %v203, 0.0
    %v268 = vmax.f32 %v204, 0.0
    %v269 = vmax.f32 %v205, 0.0
    %v270 = vmax.f32 %v206, 0.0
    %v271 = vmax.f32 %v207, 0.0
    %v272 = vmax.f32 %v208, 0.0
    %v273 = vmax.f32 %v209, 0.0
    %v274 = vmax.f32 %v210, 0.0
    %v275 = vmax.f32 %v211, 0.0
    %v276 = vmax.f32 %v212, 0.0
    %v277 = vmax.f32 %v213, 0.0
    %v278 = vmax.f32 %v214, 0.0
    %v279 = vmax.f32 %v215, 0.0
    %v280 = vmax.f32 %v216, 0.0
    %v281 = vmax.f32 %v217, 0.0
    %v282 = vmax.f32 %v218, 0.0
    %v283 = vmax.f32 %v219, 0.0
    %v284 = vmax.f32 %v220, 0.0
    %v285 = vmax.f32 %v221, 0.0
    %v286 = vmax.f32 %v222, 0.0
    %v287 = vmax.f32 %v223, 0.0
    %v288 = vmax.f32 %v224, 0.0
    %v289 = vmax.f32 %v225, 0.0
    %v290 = vmax.f32 %v226, 0.0
    %v291 = vmax.f32 %v227, 0.0
    %v292 = vmax.f32 %v228, 0.0
    %v293 = vld [vmem:[#allocation2] sm:$0xff]
    %v294 = vld [vmem:[#allocation2 + $0x8] sm:$0xff]
    %v295 = vld [vmem:[#allocation2 + $0x10] sm:$0xff]
    %v296 = vld [vmem:[#allocation2 + $0x18] sm:$0xff]
    %v297 = vld [vmem:[#allocation2 + $0x20] sm:$0xff]
    %v298 = vld [vmem:[#allocation2 + $0x28] sm:$0xff]
    %v299 = vld [vmem:[#allocation2 + $0x30] sm:$0xff]
    %v300 = vld [vmem:[#allocation2 + $0x38] sm:$0xff]
    %v301 = vld [vmem:[#allocation2 + $0x40] sm:$0xff]
    %v302 = vld [vmem:[#allocation2 + $0x48] sm:$0xff]
    %v303 = vld [vmem:[#allocation2 + $0x50] sm:$0xff]
    %v304 = vld [vmem:[#allocation2 + $0x58] sm:$0xff]
    %v305 = vld [vmem:[#allocation2 + $0x60] sm:$0xff]
    %v306 = vld [vmem:[#allocation2 + $0x68] sm:$0xff]
    %v307 = vld [vmem:[#allocation2 + $0x70] sm:$0xff]
    %v308 = vld [vmem:[#allocation2 + $0x78] sm:$0xff]
    %v309 = vld [vmem:[#allocation2 + $0x80] sm:$0xff]
    %v310 = vld [vmem:[#allocation2 + $0x88] sm:$0xff]
    %v311 = vld [vmem:[#allocation2 + $0x90] sm:$0xff]
    %v312 = vld [vmem:[#allocation2 + $0x98] sm:$0xff]
    %v313 = vld [vmem:[#allocation2 + $0xa0] sm:$0xff]
    %v314 = vld [vmem:[#allocation2 + $0xa8] sm:$0xff]
    %v315 = vld [vmem:[#allocation2 + $0xb0] sm:$0xff]
    %v316 = vld [vmem:[#allocation2 + $0xb8] sm:$0xff]
    %v317 = vld [vmem:[#allocation2 + $0xc0] sm:$0xff]
    %v318 = vld [vmem:[#allocation2 + $0xc8] sm:$0xff]
    %v319 = vld [vmem:[#allocation2 + $0xd0] sm:$0xff]
    %v320 = vld [vmem:[#allocation2 + $0xd8] sm:$0xff]
    %v321 = vld [vmem:[#allocation2 + $0xe0] sm:$0xff]
    %v322 = vld [vmem:[#allocation2 + $0xe8] sm:$0xff]
    %v323 = vld [vmem:[#allocation2 + $0xf0] sm:$0xff]
    %v324 = vld [vmem:[#allocation2 + $0xf8] sm:$0xff]
    %325 = vmatprep.subr.mxu0 0.0
    %326 = vmatpush1.msra.mxu0 %v293
    %327 = vmatprep.subr.mxu0 0.0
    %328 = vmatpush1.msra.mxu0 %v294
    %329 = vmatprep.subr.mxu0 0.0
    %330 = vmatpush1.msra.mxu0 %v295
    %331 = vmatprep.subr.mxu0 0.0
    %332 = vmatpush1.msra.mxu0 %v296
    %333 = vmatprep.subr.mxu0 0.0
    %334 = vmatpush1.msra.mxu0 %v297
    %335 = vmatprep.subr.mxu0 0.0
    %336 = vmatpush1.msra.mxu0 %v298
    %337 = vmatprep.subr.mxu0 0.0
    %338 = vmatpush1.msra.mxu0 %v299
    %339 = vmatprep.subr.mxu0 0.0
    %340 = vmatpush1.msra.mxu0 %v300
    %341 = vmatprep.subr.mxu0 0.0
    %342 = vmatpush1.msra.mxu0 %v301
    %343 = vmatprep.subr.mxu0 0.0
    %344 = vmatpush1.msra.mxu0 %v302
    %345 = vmatprep.subr.mxu0 0.0
    %346 = vmatpush1.msra.mxu0 %v303
    %347 = vmatprep.subr.mxu0 0.0
    %348 = vmatpush1.msra.mxu0 %v304
    %349 = vmatprep.subr.mxu0 0.0
    %350 = vmatpush1.msra.mxu0 %v305
    %351 = vmatprep.subr.mxu0 0.0
    %352 = vmatpush1.msra.mxu0 %v306
    %353 = vmatprep.subr.mxu0 0.0
    %354 = vmatpush1.msra.mxu0 %v307
    %355 = vmatprep.subr.mxu0 0.0
    %356 = vmatpush1.msra.mxu0 %v308
    %357 = vmatprep.subr.mxu0 0.0
    %358 = vmatpush1.msra.mxu0 %v309
    %359 = vmatprep.subr.mxu0 0.0
    %360 = vmatpush1.msra.mxu0 %v310
    %361 = vmatprep.subr.mxu0 0.0
    %362 = vmatpush1.msra.mxu0 %v311
    %363 = vmatprep.subr.mxu0 0.0
    %364 = vmatpush1.msra.mxu0 %v312
    %365 = vmatprep.subr.mxu0 0.0
    %366 = vmatpush1.msra.mxu0 %v313
    %367 = vmatprep.subr.mxu0 0.0
    %368 = vmatpush1.msra.mxu0 %v314
    %369 = vmatprep.subr.mxu0 0.0
    %370 = vmatpush1.msra.mxu0 %v315
    %371 = vmatprep.subr.mxu0 0.0
    %372 = vmatpush1.msra.mxu0 %v316
    %373 = vmatprep.subr.mxu0 0.0
    %374 = vmatpush1.msra.mxu0 %v317
    %375 = vmatprep.subr.mxu0 0.0
    %376 = vmatpush1.msra.mxu0 %v318
    %377 = vmatprep.subr.mxu0 0.0
    %378 = vmatpush1.msra.mxu0 %v319
    %379 = vmatprep.subr.mxu0 0.0
    %380 = vmatpush1.msra.mxu0 %v320
    %381 = vmatprep.subr.mxu0 0.0
    %382 = vmatpush1.msra.mxu0 %v321
    %383 = vmatprep.subr.mxu0 0.0
    %384 = vmatpush1.msra.mxu0 %v322
    %385 = vmatprep.subr.mxu0 0.0
    %386 = vmatpush1.msra.mxu0 %v323
    %387 = vmatprep.subr.mxu0 0.0
    %388 = vmatpush1.msra.mxu0 %v324
    %389 = vmatprep.mubr.f32.mxu0 %v230
    %390 = vmatmul.mubr.f32.gmra.mrb[0].mxu0 %v229
    %v391 = vpop.f32.mrb[0].mxu0
    %v392 = vadd.f32 1e-05, %v391
    %v393 = vpop.f32.mrb[0].mxu0
    %394 = vmatprep.mubr.f32.mxu0 %v232
    %395 = vmatmul.mubr.f32.gmra.mrb[0].mxu0 %v231
    %v396 = vpop.f32.mrb[0].mxu0
    %v397 = vadd.f32 1e-05, %v396
    %v398 = vpop.f32.mrb[0].mxu0
    %399 = vmatprep.mubr.f32.mxu0 %v234
    %400 = vmatmul.mubr.f32.gmra.mrb[0].mxu0 %v233
    %v401 = vpop.f32.mrb[0].mxu0
    %v402 = vadd.f32 1e-05, %v401
    %v403 = vpop.f32.mrb[0].mxu0
    %404 = vmatprep.mubr.f32.mxu0 %v236
    %405 = vmatmul.mubr.f32.gmra.mrb[0].mxu0 %v235
    %v406 = vpop.f32.mrb[0].mxu0
    %v407 = vadd.f32 1e-05, %v406
    %v408 = vpop.f32.mrb[0].mxu0
    %409 = vmatprep.mubr.f32.mxu0 %v238
    %410 = vmatmul.mubr.f32.gmra.mrb[0].mxu0 %v237
    %v411 = vpop.f32.mrb[0].mxu0
    %v412 = vadd.f32 1e-05, %v411
    %v413 = vpop.f32.mrb[0].mxu0
    %414 = vmatprep.mubr.f32.mxu0 %v240
    %415 = vmatmul.mubr.f32.gmra.mrb[0].mxu0 %v239
    %v416 = vpop.f32.mrb[0].mxu0
    %v417 = vadd.f32 1e-05, %v416
    %v418 = vpop.f32.mrb[0].mxu0
    %419 = vmatprep.mubr.f32.mxu0 %v242
    %420 = vmatmul.mubr.f32.gmra.mrb[0].mxu0 %v241
    %v421 = vpop.f32.mrb[0].mxu0
    %v422 = vadd.f32 1e-05, %v421
    %v423 = vpop.f32.mrb[0].mxu0
    %424 = vmatprep.mubr.f32.mxu0 %v244
    %425 = vmatmul.mubr.f32.gmra.mrb[0].mxu0 %v243
    %v426 = vpop.f32.mrb[0].mxu0
    %v427 = vadd.f32 1e-05, %v426
    %v428 = vpop.f32.mrb[0].mxu0
    %429 = vmatprep.mubr.f32.mxu0 %v246
    %430 = vmatmul.mubr.f32.gmra.mrb[0].mxu0 %v245
    %v431 = vpop.f32.mrb[0].mxu0
    %v432 = vadd.f32 1e-05, %v431
    %v433 = vpop.f32.mrb[0].mxu0
    %434 = vmatprep.mubr.f32.mxu0 %v248
    %435 = vmatmul.mubr.f32.gmra.mrb[0].mxu0 %v247
    %v436 = vpop.f32.mrb[0].mxu0
    %v437 = vadd.f32 1e-05, %v436
    %v438 = vpop.f32.mrb[0].mxu0
    %439 = vmatprep.mubr.f32.mxu0 %v250
    %440 = vmatmul.mubr.f32.gmra.mrb[0].mxu0 %v249
    %v441 = vpop.f32.mrb[0].mxu0
    %v442 = vadd.f32 1e-05, %v441
    %v443 = vpop.f32.mrb[0].mxu0
    %444 = vmatprep.mubr.f32.mxu0 %v252
    %445 = vmatmul.mubr.f32.gmra.mrb[0].mxu0 %v251
    %v446 = vpop.f32.mrb[0].mxu0
    %v447 = vadd.f32 1e-05, %v446
    %v448 = vpop.f32.mrb[0].mxu0
    %449 = vmatprep.mubr.f32.mxu0 %v254
    %450 = vmatmul.mubr.f32.gmra.mrb[0].mxu0 %v253
    %v451 = vpop.f32.mrb[0].mxu0
    %v452 = vadd.f32 1e-05, %v451
    %v453 = vpop.f32.mrb[0].mxu0
    %454 = vmatprep.mubr.f32.mxu0 %v256
    %455 = vmatmul.mubr.f32.gmra.mrb[0].mxu0 %v255
    %v456 = vpop.f32.mrb[0].mxu0
    %v457 = vadd.f32 1e-05, %v456
    %v458 = vpop.f32.mrb[0].mxu0
    %459 = vmatprep.mubr.f32.mxu0 %v258
    %460 = vmatmul.mubr.f32.gmra.mrb[0].mxu0 %v257
    %v461 = vpop.f32.mrb[0].mxu0
    %v462 = vadd.f32 1e-05, %v461
    %v463 = vpop.f32.mrb[0].mxu0
    %464 = vmatprep.mubr.f32.mxu0 %v260
    %465 = vmatmul.mubr.f32.gmra.mrb[0].mxu0 %v259
    %v466 = vpop.f32.mrb[0].mxu0
    %v467 = vadd.f32 1e-05, %v466
    %v468 = vpop.f32.mrb[0].mxu0
    %469 = vmatprep.mubr.f32.mxu0 %v262
    %470 = vmatmul.mubr.f32.gmra.mrb[0].mxu0 %v261
    %v471 = vpop.f32.mrb[0].mxu0
    %v472 = vadd.f32 1e-05, %v471
    %v473 = vpop.f32.mrb[0].mxu0
    %474 = vmatprep.mubr.f32.mxu0 %v264
    %475 = vmatmul.mubr.f32.gmra.mrb[0].mxu0 %v263
    %v476 = vpop.f32.mrb[0].mxu0
    %v477 = vadd.f32 1e-05, %v476
    %v478 = vpop.f32.mrb[0].mxu0
    %479 = vmatprep.mubr.f32.mxu0 %v266
    %480 = vmatmul.mubr.f32.gmra.mrb[0].mxu0 %v265
    %v481 = vpop.f32.mrb[0].mxu0
    %v482 = vadd.f32 1e-05, %v481
    %v483 = vpop.f32.mrb[0].mxu0
    %484 = vmatprep.mubr.f32.mxu0 %v268
    %485 = vmatmul.mubr.f32.gmra.mrb[0].mxu0 %v267
    %v486 = vpop.f32.mrb[0].mxu0
    %v487 = vadd.f32 1e-05, %v486
    %v488 = vpop.f32.mrb[0].mxu0
    %489 = vmatprep.mubr.f32.mxu0 %v270
    %490 = vmatmul.mubr.f32.gmra.mrb[0].mxu0 %v269
    %v491 = vpop.f32.mrb[0].mxu0
    %v492 = vadd.f32 1e-05, %v491
    %v493 = vpop.f32.mrb[0].mxu0
    %494 = vmatprep.mubr.f32.mxu0 %v272
    %495 = vmatmul.mubr.f32.gmra.mrb[0].mxu0 %v271
    %v496 = vpop.f32.mrb[0].mxu0
    %v497 = vadd.f32 1e-05, %v496
    %v498 = vpop.f32.mrb[0].mxu0
    %499 = vmatprep.mubr.f32.mxu0 %v274
    %500 = vmatmul.mubr.f32.gmra.mrb[0].mxu0 %v273
    %v501 = vpop.f32.mrb[0].mxu0
    %v502 = vadd.f32 1e-05, %v501
    %v503 = vpop.f32.mrb[0].mxu0
    %504 = vmatprep.mubr.f32.mxu0 %v276
    %505 = vmatmul.mubr.f32.gmra.mrb[0].mxu0 %v275
    %v506 = vpop.f32.mrb[0].mxu0
    %v507 = vadd.f32 1e-05, %v506
    %v508 = vpop.f32.mrb[0].mxu0
    %509 = vmatprep.mubr.f32.mxu0 %v278
    %510 = vmatmul.mubr.f32.gmra.mrb[0].mxu0 %v277
    %v511 = vpop.f32.mrb[0].mxu0
    %v512 = vadd.f32 1e-05, %v511
    %v513 = vpop.f32.mrb[0].mxu0
    %514 = vmatprep.mubr.f32.mxu0 %v280
    %515 = vmatmul.mubr.f32.gmra.mrb[0].mxu0 %v279
    %v516 = vpop.f32.mrb[0].mxu0
    %v517 = vadd.f32 1e-05, %v516
    %v518 = vpop.f32.mrb[0].mxu0
    %519 = vmatprep.mubr.f32.mxu0 %v282
    %520 = vmatmul.mubr.f32.gmra.mrb[0].mxu0 %v281
    %v521 = vpop.f32.mrb[0].mxu0
    %v522 = vadd.f32 1e-05, %v521
    %v523 = vpop.f32.mrb[0].mxu0
    %524 = vmatprep.mubr.f32.mxu0 %v284
    %525 = vmatmul.mubr.f32.gmra.mrb[0].mxu0 %v283
    %v526 = vpop.f32.mrb[0].mxu0
    %v527 = vadd.f32 1e-05, %v526
    %v528 = vpop.f32.mrb[0].mxu0
    %529 = vmatprep.mubr.f32.mxu0 %v286
    %530 = vmatmul.mubr.f32.gmra.mrb[0].mxu0 %v285
    %v531 = vpop.f32.mrb[0].mxu0
    %v532 = vadd.f32 1e-05, %v531
    %v533 = vpop.f32.mrb[0].mxu0
    %534 = vmatprep.mubr.f32.mxu0 %v288
    %535 = vmatmul.mubr.f32.gmra.mrb[0].mxu0 %v287
    %v536 = vpop.f32.mrb[0].mxu0
    %v537 = vadd.f32 1e-05, %v536
    %v538 = vpop.f32.mrb[0].mxu0
    %539 = vmatprep.mubr.f32.mxu0 %v290
    %540 = vmatmul.mubr.f32.gmra.mrb[0].mxu0 %v289
    %v541 = vpop.f32.mrb[0].mxu0
    %v542 = vadd.f32 1e-05, %v541
    %v543 = vpop.f32.mrb[0].mxu0
    %544 = vmatprep.mubr.f32.mxu0 %v292
    %545 = vmatmul.mubr.f32.gmra.mrb[0].mxu0 %v291
    %v546 = vpop.f32.mrb[0].mxu0
    %v547 = vadd.f32 1e-05, %v546
    %v548 = vpop.f32.mrb[0].mxu0
    %549 = vdwg.mxu0
    %550 = vxpose.xlu0.b32.start [1/16] %v392, 128
    %551 = vxpose.xlu0.b32.cont [2/16] %v397, 128
    %552 = vxpose.xlu0.b32.cont [3/16] %v402, 128
    %553 = vxpose.xlu0.b32.cont [4/16] %v407, 128
    %554 = vxpose.xlu0.b32.cont [5/16] %v412, 128
    %555 = vxpose.xlu0.b32.cont [6/16] %v417, 128
    %556 = vxpose.xlu0.b32.cont [7/16] %v422, 128
    %557 = vxpose.xlu0.b32.cont [8/16] %v427, 128
    %558 = vxpose.xlu0.b32.cont [9/16] %v432, 128
    %559 = vxpose.xlu0.b32.cont [10/16] %v437, 128
    %560 = vxpose.xlu0.b32.cont [11/16] %v442, 128
    %561 = vxpose.xlu0.b32.cont [12/16] %v447, 128
    %562 = vxpose.xlu0.b32.cont [13/16] %v452, 128
    %563 = vxpose.xlu0.b32.cont [14/16] %v457, 128
    %564 = vxpose.xlu0.b32.cont [15/16] %v462, 128
    %565 = vxpose.xlu0.b32.end [16/16] %v467, 128
    %v566 = vpop.trf.xlu0
    %v567 = vpop.trf.xlu0
    %v568 = vpop.trf.xlu0
    %v569 = vpop.trf.xlu0
    %v570 = vpop.trf.xlu0
    %v571 = vpop.trf.xlu0
    %v572 = vpop.trf.xlu0
    %v573 = vpop.trf.xlu0
    %v574 = vpop.trf.xlu0
    %v575 = vpop.trf.xlu0
    %v576 = vpop.trf.xlu0
    %v577 = vpop.trf.xlu0
    %v578 = vpop.trf.xlu0
    %v579 = vpop.trf.xlu0
    %v580 = vpop.trf.xlu0
    %v581 = vpop.trf.xlu0
    %582 = vxpose.xlu0.b32.start [1/16] %v472, 128
    %583 = vxpose.xlu0.b32.cont [2/16] %v477, 128
    %584 = vxpose.xlu0.b32.cont [3/16] %v482, 128
    %585 = vxpose.xlu0.b32.cont [4/16] %v487, 128
    %586 = vxpose.xlu0.b32.cont [5/16] %v492, 128
    %587 = vxpose.xlu0.b32.cont [6/16] %v497, 128
    %588 = vxpose.xlu0.b32.cont [7/16] %v502, 128
    %589 = vxpose.xlu0.b32.cont [8/16] %v507, 128
    %590 = vxpose.xlu0.b32.cont [9/16] %v512, 128
    %591 = vxpose.xlu0.b32.cont [10/16] %v517, 128
    %592 = vxpose.xlu0.b32.cont [11/16] %v522, 128
    %593 = vxpose.xlu0.b32.cont [12/16] %v527, 128
    %594 = vxpose.xlu0.b32.cont [13/16] %v532, 128
    %595 = vxpose.xlu0.b32.cont [14/16] %v537, 128
    %596 = vxpose.xlu0.b32.cont [15/16] %v542, 128
    %597 = vxpose.xlu0.b32.end [16/16] %v547, 128
    %v598 = vpop.trf.xlu0
    %v599 = vpop.trf.xlu0
    %v600 = vpop.trf.xlu0
    %v601 = vpop.trf.xlu0
    %v602 = vpop.trf.xlu0
    %v603 = vpop.trf.xlu0
    %v604 = vpop.trf.xlu0
    %v605 = vpop.trf.xlu0
    %v606 = vpop.trf.xlu0
    %v607 = vpop.trf.xlu0
    %v608 = vpop.trf.xlu0
    %v609 = vpop.trf.xlu0
    %v610 = vpop.trf.xlu0
    %v611 = vpop.trf.xlu0
    %v612 = vpop.trf.xlu0
    %v613 = vpop.trf.xlu0
    %v614 = vld [vmem:[#allocation6] sm:$0xff]
    %v615 = vld [vmem:[#allocation6 + $0x8] sm:$0xff]
    %v616 = vld [vmem:[#allocation6 + $0x10] sm:$0xff]
    %v617 = vld [vmem:[#allocation6 + $0x18] sm:$0xff]
    %v618 = vrcp.pop %v566
    %v619 = vrcp.pop %v598
    %v620 = vrcp.pop %v567
    %v621 = vrcp.pop %v599
    %v622 = vmul.f32 %v614, %v618
    %v623 = vmul.f32 %v615, %v619
    %v624 = vmul.f32 %v616, %v620
    %v625 = vmul.f32 %v617, %v621
    %v626 = vld [vmem:[#allocation9] sm:$0xff]
    %v627 = vld [vmem:[#allocation9 + $0x8] sm:$0xff]
    %v628 = vld [vmem:[#allocation9 + $0x10] sm:$0xff]
    %v629 = vld [vmem:[#allocation9 + $0x18] sm:$0xff]
    %630 = vmatprep.subr.mxu0 %v230
    %631 = vmatpush1.msra.mxu0 %v229
    %632 = vmatprep.subr.mxu0 %v232
    %633 = vmatpush1.msra.mxu0 %v231
    %634 = vmatprep.subr.mxu0 %v234
    %635 = vmatpush1.msra.mxu0 %v233
    %636 = vmatprep.subr.mxu0 %v236
    %637 = vmatpush1.msra.mxu0 %v235
    %638 = vmatprep.subr.mxu0 %v238
    %639 = vmatpush1.msra.mxu0 %v237
    %640 = vmatprep.subr.mxu0 %v240
    %641 = vmatpush1.msra.mxu0 %v239
    %642 = vmatprep.subr.mxu0 %v242
    %643 = vmatpush1.msra.mxu0 %v241
    %644 = vmatprep.subr.mxu0 %v244
    %645 = vmatpush1.msra.mxu0 %v243
    %646 = vmatprep.subr.mxu0 %v246
    %647 = vmatpush1.msra.mxu0 %v245
    %648 = vmatprep.subr.mxu0 %v248
    %649 = vmatpush1.msra.mxu0 %v247
    %650 = vmatprep.subr.mxu0 %v250
    %651 = vmatpush1.msra.mxu0 %v249
    %652 = vmatprep.subr.mxu0 %v252
    %653 = vmatpush1.msra.mxu0 %v251
    %654 = vmatprep.subr.mxu0 %v254
    %655 = vmatpush1.msra.mxu0 %v253
    %656 = vmatprep.subr.mxu0 %v256
    %657 = vmatpush1.msra.mxu0 %v255
    %658 = vmatprep.subr.mxu0 %v258
    %659 = vmatpush1.msra.mxu0 %v257
    %660 = vmatprep.subr.mxu0 %v260
    %661 = vmatpush1.msra.mxu0 %v259
    %662 = vmatprep.subr.mxu0 %v262
    %663 = vmatpush1.msra.mxu0 %v261
    %664 = vmatprep.subr.mxu0 %v264
    %665 = vmatpush1.msra.mxu0 %v263
    %666 = vmatprep.subr.mxu0 %v266
    %667 = vmatpush1.msra.mxu0 %v265
    %668 = vmatprep.subr.mxu0 %v268
    %669 = vmatpush1.msra.mxu0 %v267
    %670 = vmatprep.subr.mxu0 %v270
    %671 = vmatpush1.msra.mxu0 %v269
    %672 = vmatprep.subr.mxu0 %v272
    %673 = vmatpush1.msra.mxu0 %v271
    %674 = vmatprep.subr.mxu0 %v274
    %675 = vmatpush1.msra.mxu0 %v273
    %676 = vmatprep.subr.mxu0 %v276
    %677 = vmatpush1.msra.mxu0 %v275
    %678 = vmatprep.subr.mxu0 %v278
    %679 = vmatpush1.msra.mxu0 %v277
    %680 = vmatprep.subr.mxu0 %v280
    %681 = vmatpush1.msra.mxu0 %v279
    %682 = vmatprep.subr.mxu0 %v282
    %683 = vmatpush1.msra.mxu0 %v281
    %684 = vmatprep.subr.mxu0 %v284
    %685 = vmatpush1.msra.mxu0 %v283
    %686 = vmatprep.subr.mxu0 %v286
    %687 = vmatpush1.msra.mxu0 %v285
    %688 = vmatprep.subr.mxu0 %v288
    %689 = vmatpush1.msra.mxu0 %v287
    %690 = vmatprep.subr.mxu0 %v290
    %691 = vmatpush1.msra.mxu0 %v289
    %692 = vmatprep.subr.mxu0 %v292
    %693 = vmatpush1.msra.mxu0 %v291
    %694 = vmatprep.mubr.f32.mxu0 %v623
    %695 = vmatmul.mubr.f32.gmra.mrb[0].mxu0 %v622
    %v696 = vpop.f32.mrb[0].mxu0
    %v697 = vadd.f32 0.0, %v696
    %v698 = vpop.f32.mrb[0].mxu0
    %v699 = vadd.f32 0.0, %v698
    %700 = vmatprep.mubr.f32.mxu0 %v625
    %701 = vmatmul.mubr.f32.gmra.mrb[0].mxu0 %v624
    %v702 = vpop.f32.mrb[0].mxu0
    %v703 = vadd.f32 0.0, %v702
    %v704 = vpop.f32.mrb[0].mxu0
    %v705 = vadd.f32 0.0, %v704
    %706 = vdwg.mxu0
    %v707 = vadd.f32 %v626, %v697
    %v708 = vadd.f32 %v627, %v699
    %v709 = vadd.f32 %v628, %v703
    %v710 = vadd.f32 %v629, %v705
    %711 = vst [vmem:[#allocation9] sm:$0xff] %v707
    %712 = vst [vmem:[#allocation9 + $0x8] sm:$0xff] %v708
    %713 = vst [vmem:[#allocation9 + $0x10] sm:$0xff] %v709
    %714 = vst [vmem:[#allocation9 + $0x18] sm:$0xff] %v710
    // Predicated region
    $region30: #{tpu_custom_call.1} parent=1 // pred_check
      %p715 = pneg %p56
    $region31: #{tpu_custom_call.1} parent=1 // pred_check_branch
      %717 = sbr.rel (%p715) target = $region33
    $region32: #{tpu_custom_call.1} parent=1 // pred_region
      %v718 = vld [vmem:[#allocation3] sm:$0xff]
      %v719 = vld [vmem:[#allocation3 + $0x8] sm:$0xff]
      %v720 = vld [vmem:[#allocation3 + $0x10] sm:$0xff]
      %v721 = vld [vmem:[#allocation3 + $0x18] sm:$0xff]
      %v722 = vld [vmem:[#allocation9] sm:$0xff]
      %v723 = vld [vmem:[#allocation9 + $0x8] sm:$0xff]
      %v724 = vld [vmem:[#allocation9 + $0x10] sm:$0xff]
      %v725 = vld [vmem:[#allocation9 + $0x18] sm:$0xff]
      %v726 = vmul.f32 %v718, %v722
      %v727 = vmul.f32 %v719, %v723
      %v728 = vmul.f32 %v720, %v724
      %v729 = vmul.f32 %v721, %v725
      %730 = vst [vmem:[#allocation9] sm:$0xff] %v726
      %731 = vst [vmem:[#allocation9 + $0x8] sm:$0xff] %v727
      %732 = vst [vmem:[#allocation9 + $0x10] sm:$0xff] %v728
      %733 = vst [vmem:[#allocation9 + $0x18] sm:$0xff] %v729
    $region33: #{tpu_custom_call.1} parent=1 // pred_fallthru
      _
    // Predicated region
    $region34: #{tpu_custom_call.1} parent=1 // pred_check
      _
    $region35: #{tpu_custom_call.1} parent=1 // pred_check_branch
      %735 = sbr.rel (0) target = $region37
    $region36: #{tpu_custom_call.1} parent=1 // pred_region
      %s737 = ssub.s32 512, 512
      %738 = vsyncadd [#allocation5], %s737
      %s739 = sshll.u32 [#allocation9], 4
      %s740 = int_to_ptr.vmem [resolvable:$true] %s739
      %745 = dma.vmem_to_hbm [thread:$0]  %s740, 512, %s3, [#allocation5], 256, 256, 16
    $region37: #{tpu_custom_call.1} parent=1 // pred_fallthru
      _
    // Predicated region
    $region38: #{tpu_custom_call.1} parent=1 // pred_check
      _
    $region39: #{tpu_custom_call.1} parent=1 // pred_check_branch
      %747 = sbr.rel (0) target = $region41
    $region40: #{tpu_custom_call.1} parent=1 // pred_region
      %748 = dma.done [#allocation5], 512
    $region41: #{tpu_custom_call.1} parent=1 // pred_fallthru
      _
    %749 = vsyncpa [#allocation4], 1
    %750 = vsyncpa [#allocation7], 1
    %751 = vsyncpa [#allocation5], 1

</llo_original>
